<compile_context>
chip_gen: v7x
topology: tpu7x:2x2x1
jax: 0.10.0
libtpu: 0.0.40
codegen_flags: <defaults>
</compile_context>

<pallas_src>
import functools

import numpy as np

import jax
import jax.numpy as jnp
from jax.experimental import pallas as pl
from jax.experimental.pallas import tpu as pltpu


def _hetero_loss_kernel(f1_ref, f2_ref, out_ref, *,
                        groups_per_block, chunk, num_groups, margin):
    b = pl.program_id(0)

    # Load in native dtype, upcast in-register (v5e VPU has no bf16 math).
    f1 = f1_ref[...].astype(jnp.float32)          # (B, chunk, D)
    f2 = f2_ref[...].astype(jnp.float32)          # (B, chunk, D)

    # mean(f1) - mean(f2) == sum(f1 - f2) / chunk  -> single reduction over diff
    s = jnp.sum(f1 - f2, axis=1)                  # (B, D)
    dist = jnp.sum(s * s, axis=1, keepdims=True) * (1.0 / (chunk * chunk))  # (B, 1)
    hinge = jnp.maximum(dist - margin, 0.0)       # (B, 1)

    # Mask groups that only exist because of padding to a multiple of B.
    gidx = b * groups_per_block + jax.lax.broadcasted_iota(jnp.int32, hinge.shape, 0)
    hinge = jnp.where(gidx < num_groups, hinge, 0.0)

    partial = jnp.sum(hinge)                      # scalar partial loss for this block
    # Lane-dense (1, 8, 128) output block; wrapper reads [:, 0, 0].
    out_ref[...] = jnp.full(out_ref.shape, partial, dtype=out_ref.dtype)


def hetero_loss(feat1, feat2, label1=None, label2=None, *,
                margin=0.1, label_num=None):
    """Pallas implementation of hetero_loss (dist_type='l2').

    Pass `label_num` explicitly when possible; otherwise it is derived
    host-side from label1 (one-time sync, mirrors label1.unique()).
    label2 is accepted but unused, exactly like the PyTorch module.
    """
    feat1 = jnp.asarray(feat1)
    feat2 = jnp.asarray(feat2)
    n, d = feat1.shape

    if label_num is None:
        label_num = int(np.unique(np.asarray(label1)).shape[0])
    assert n % label_num == 0, "torch.chunk semantics assume an even split here"
    g = int(label_num)
    chunk = n // g

    # (G, chunk, D) — free reshape, rows assumed pre-grouped by label
    f1g = feat1.reshape(g, chunk, d)
    f2g = feat2.reshape(g, chunk, d)

    # Groups per grid step: target ~2 MiB per input tile.
    # 2 inputs x 2 pipeline buffers x 2 MiB = 8 MiB, safe within the scoped
    # VMEM limits of v5e (16 MiB default) / v6e (32) / v7x (32 of 64 physical).
    bytes_per_group = chunk * d * jnp.dtype(feat1.dtype).itemsize
    target_tile_bytes = 2 * 1024 * 1024
    gpb = max(1, min(g, target_tile_bytes // max(1, bytes_per_group)))
    num_blocks = (g + gpb - 1) // gpb
    g_pad = num_blocks * gpb
    if g_pad != g:
        pad = ((0, g_pad - g), (0, 0), (0, 0))
        f1g = jnp.pad(f1g, pad)
        f2g = jnp.pad(f2g, pad)

    kernel = functools.partial(
        _hetero_loss_kernel,
        groups_per_block=gpb,
        chunk=chunk,
        num_groups=g,
        margin=float(margin),
    )

    partials = pl.pallas_call(
        kernel,
        out_shape=jax.ShapeDtypeStruct((num_blocks, 8, 128), jnp.float32),
        grid_spec=pltpu.PrefetchScalarGridSpec(
            num_scalar_prefetch=0,
            grid=(num_blocks,),
            in_specs=[
                pl.BlockSpec((gpb, chunk, d), lambda b: (b, 0, 0)),
                pl.BlockSpec((gpb, chunk, d), lambda b: (b, 0, 0)),
            ],
            out_specs=pl.BlockSpec((1, 8, 128), lambda b: (b, 0, 0)),
        ),
        compiler_params=pltpu.CompilerParams(
            # Each grid step writes an independent output block -> parallel.
            dimension_semantics=("parallel",),
            vmem_limit_bytes=32 * 1024 * 1024,
        ),
    )(f1g, f2g)

    return jnp.sum(partials[:, 0, 0])


def _reference(feat1, feat2, label1, margin=0.1):
    """Plain-JAX reference mirroring the PyTorch forward."""
    label_num = int(np.unique(np.asarray(label1)).shape[0])
    n = feat1.shape[0]
    chunk = n // label_num
    feat1 = jnp.asarray(feat1, jnp.float32)
    feat2 = jnp.asarray(feat2, jnp.float32)
    total = 0.0
    for i in range(label_num):
        c1 = jnp.mean(feat1[i * chunk:(i + 1) * chunk], axis=0)
        c2 = jnp.mean(feat2[i * chunk:(i + 1) * chunk], axis=0)
        dist = jnp.sum((c1 - c2) ** 2)
        total = total + jnp.maximum(dist - margin, 0.0)
    return total


if __name__ == "__main__":
    key = jax.random.PRNGKey(0)
    k1, k2 = jax.random.split(key)

    N, D = 8, 32          # small shapes: 8 samples, 32-dim features
    G = 2                 # two identity groups
    feat1 = jax.random.normal(k1, (N, D), dtype=jnp.float32)
    feat2 = jax.random.normal(k2, (N, D), dtype=jnp.float32)
    label1 = jnp.array([0, 0, 0, 0, 1, 1, 1, 1], dtype=jnp.int32)
    label2 = jnp.array([0, 0, 0, 0, 1, 1, 1, 1], dtype=jnp.int32)

    loss = hetero_loss(feat1, feat2, label1, label2, margin=0.1, label_num=G)
    loss = jax.block_until_ready(loss)

    ref = _reference(feat1, feat2, label1, margin=0.1)
    assert jnp.allclose(loss, ref, rtol=1e-5, atol=1e-5), (loss, ref)

    print("KERNEL_OK")
</pallas_src>

<mosaic_0001>
module attributes {stable_mosaic.version = 11 : i64} {
  func.func @_hetero_loss_kernel(%arg0: i32, %arg1: memref<2x4x32xf32, #tpu.memory_space<vmem>>, %arg2: memref<2x4x32xf32, #tpu.memory_space<vmem>>, %arg3: memref<1x8x128xf32, #tpu.memory_space<vmem>>) attributes {dimension_semantics = [#tpu.dimension_semantics<parallel>], iteration_bounds = array<i64: 1>, scalar_prefetch = 0 : i64, scratch_operands = 0 : i64, tpu.core_type = #tpu.core_type<tc>, window_params = [{transform_indices = @transform_0, window_bounds = array<i64: 2, 4, 32>}, {transform_indices = @transform_1, window_bounds = array<i64: 2, 4, 32>}, {transform_indices = @transform_2, window_bounds = array<i64: 1, 8, 128>}]} {
    %c0 = arith.constant 0 : index
    %c0_0 = arith.constant 0 : index
    %c0_1 = arith.constant 0 : index
    %0 = vector.load %arg1[%c0, %c0_0, %c0_1] : memref<2x4x32xf32, #tpu.memory_space<vmem>>, vector<2x4x32xf32>
    %c0_2 = arith.constant 0 : index
    %c0_3 = arith.constant 0 : index
    %c0_4 = arith.constant 0 : index
    %1 = vector.load %arg2[%c0_2, %c0_3, %c0_4] : memref<2x4x32xf32, #tpu.memory_space<vmem>>, vector<2x4x32xf32>
    %2 = arith.subf %0, %1 : vector<2x4x32xf32>
    %cst = arith.constant dense<0.000000e+00> : vector<2x32xf32>
    %3 = vector.multi_reduction <add>, %2, %cst [1] : vector<2x4x32xf32> to vector<2x32xf32>
    %4 = arith.mulf %3, %3 : vector<2x32xf32>
    %cst_5 = arith.constant dense<0.000000e+00> : vector<2xf32>
    %5 = vector.multi_reduction <add>, %4, %cst_5 [1] : vector<2x32xf32> to vector<2xf32>
    %6 = vector.shape_cast %5 : vector<2xf32> to vector<2x1xf32>
    %cst_6 = arith.constant 6.250000e-02 : f32
    %7 = vector.broadcast %cst_6 : f32 to vector<2x1xf32>
    %8 = arith.mulf %6, %7 : vector<2x1xf32>
    %cst_7 = arith.constant 1.000000e-01 : f32
    %9 = vector.broadcast %cst_7 : f32 to vector<2x1xf32>
    %10 = arith.subf %8, %9 : vector<2x1xf32>
    %cst_8 = arith.constant 0.000000e+00 : f32
    %11 = vector.broadcast %cst_8 : f32 to vector<2x1xf32>
    %12 = arith.maximumf %10, %11 : vector<2x1xf32>
    %c2_i32 = arith.constant 2 : i32
    %13 = arith.muli %arg0, %c2_i32 : i32
    %14 = tpu.iota {dimensions = array<i32: 0>} : vector<2x1xi32>
    %15 = vector.broadcast %13 : i32 to vector<2x1xi32>
    %16 = arith.addi %15, %14 : vector<2x1xi32>
    %c2_i32_9 = arith.constant 2 : i32
    %17 = vector.broadcast %c2_i32_9 : i32 to vector<2x1xi32>
    %18 = arith.cmpi slt, %16, %17 : vector<2x1xi32>
    %cst_10 = arith.constant 0.000000e+00 : f32
    %19 = vector.broadcast %cst_10 : f32 to vector<2x1xf32>
    %20 = arith.select %18, %12, %19 : vector<2x1xi1>, vector<2x1xf32>
    %21 = vector.shape_cast %20 : vector<2x1xf32> to vector<1x2x1xf32>
    %cst_11 = arith.constant dense<0.000000e+00> : vector<1xf32>
    %22 = vector.multi_reduction <add>, %21, %cst_11 [1, 2] : vector<1x2x1xf32> to vector<1xf32>
    %23 = vector.shape_cast %22 : vector<1xf32> to vector<1x1x1xf32>
    %24 = vector.extract %23[0, 0, 0] : f32 from vector<1x1x1xf32>
    %25 = vector.broadcast %24 : f32 to vector<1x8x128xf32>
    %c0_12 = arith.constant 0 : index
    %c0_13 = arith.constant 0 : index
    %c0_14 = arith.constant 0 : index
    %26 = vector.load %arg3[%c0_12, %c0_13, %c0_14] : memref<1x8x128xf32, #tpu.memory_space<vmem>>, vector<1x8x128xf32>
    tpu.vector_store %arg3[%c0_12, %c0_13, %c0_14], %25 {strides = array<i32>} : memref<1x8x128xf32, #tpu.memory_space<vmem>>, vector<1x8x128xf32>,
    return
  }
  func.func @transform_0(%arg0: i32) -> (i32, i32, i32) {
    %c0_i32 = arith.constant 0 : i32
    %c0_i32_0 = arith.constant 0 : i32
    %c0_i32_1 = arith.constant 0 : i32
    return %arg0, %c0_i32, %c0_i32_0 : i32, i32, i32
  }
  func.func @transform_1(%arg0: i32) -> (i32, i32, i32) {
    %c0_i32 = arith.constant 0 : i32
    %c0_i32_0 = arith.constant 0 : i32
    %c0_i32_1 = arith.constant 0 : i32
    return %arg0, %c0_i32, %c0_i32_0 : i32, i32, i32
  }
  func.func @transform_2(%arg0: i32) -> (i32, i32, i32) {
    %c0_i32 = arith.constant 0 : i32
    %c0_i32_0 = arith.constant 0 : i32
    %c0_i32_1 = arith.constant 0 : i32
    return %arg0, %c0_i32, %c0_i32_0 : i32, i32, i32
  }
}

</mosaic_0001>

<llo_original>
// kernel: tpu_custom_call.1
$region0: #{tpu_custom_call.1}
  #allocation0 [shape = 'u32[]', space=smem, size = 0x4, offset = 0x4, fixed_abs, tag = 'smem constant byte address 0x4 - core index']
  #allocation1 [shape = 'u32[144,128]{1,0:T(1,128)}', space=vmem, size = 0x12000, scoped, tag = 'internal scratch']
  %s0 = inlined_call_operand.hbm [shape: f32[2,4,32], index: 0, kind: input, shape index: {}]
  %s1 = inlined_call_operand.hbm [shape: f32[2,4,32], index: 1, kind: input, shape index: {}]
  %s2 = inlined_call_operand.hbm [shape: f32[1,8,128], index: 2, kind: output, shape index: {}]
  %s3 = sld [smem:[#allocation0]]
  $region26: #{tpu_custom_call.1} parent=0
    _
  %s5 = ssub.s32 1, %s3
  %s6 = scalar_select 0, %s5, %s3
  $region1: #{tpu_custom_call.1} parent=0
    #allocation2 [shape = 'u8[4096]{0}', space=vmem, size = 0x1000, scoped, tag = 'input window, operand 0, single buffered']
    #allocation3 [shape = 's32[1]{0}', space=sflag, size = 0x4, scoped, tag = 'scoped memory for tpu_custom_call.1']
    #allocation4 [shape = 's32[1]{0}', space=sflag, size = 0x4, scoped, tag = 'scoped memory for tpu_custom_call.1']
    #allocation5 [shape = 'u8[4096]{0}', space=vmem, size = 0x1000, scoped, tag = 'input window, operand 1, single buffered']
    #allocation6 [shape = 's32[1]{0}', space=sflag, size = 0x4, scoped, tag = 'scoped memory for tpu_custom_call.1']
    #allocation7 [shape = 'u8[4096]{0}', space=vmem, size = 0x1000, scoped, tag = 'output window, operand 0, single buffered']
    %7 = vsyncpa [#allocation3], 0
    %8 = vsyncpa [#allocation6], 0
    %9 = vsyncpa [#allocation4], 0
    // Predicated region
    $region2: #{tpu_custom_call.1} parent=1 // pred_check
      _
    $region3: #{tpu_custom_call.1} parent=1 // pred_check_branch
      %11 = sbr.rel (0) target = $region5
    $region4: #{tpu_custom_call.1} parent=1 // pred_region
      %s13 = ssub.s32 128, 128
      %14 = vsyncadd [#allocation3], %s13
      %s15 = sshll.u32 [#allocation2], 4
      %s16 = int_to_ptr.vmem [resolvable:$true] %s15
      %21 = dma.hbm_to_vmem [thread:$0]  %s0, 128, %s16, [#allocation3], 64, 64, 4
    $region5: #{tpu_custom_call.1} parent=1 // pred_fallthru
      _
    // Predicated region
    $region6: #{tpu_custom_call.1} parent=1 // pred_check
      _
    $region7: #{tpu_custom_call.1} parent=1 // pred_check_branch
      %23 = sbr.rel (0) target = $region9
    $region8: #{tpu_custom_call.1} parent=1 // pred_region
      %s25 = ssub.s32 128, 128
      %26 = vsyncadd [#allocation6], %s25
      %s27 = sshll.u32 [#allocation5], 4
      %s28 = int_to_ptr.vmem [resolvable:$true] %s27
      %33 = dma.hbm_to_vmem [thread:$0]  %s1, 128, %s28, [#allocation6], 64, 64, 4
    $region9: #{tpu_custom_call.1} parent=1 // pred_fallthru
      _
    // Predicated region
    $region10: #{tpu_custom_call.1} parent=1 // pred_check
      _
    $region11: #{tpu_custom_call.1} parent=1 // pred_check_branch
      %35 = sbr.rel (0) target = $region13
    $region12: #{tpu_custom_call.1} parent=1 // pred_region
      %36 = dma.done [#allocation3], 128
    $region13: #{tpu_custom_call.1} parent=1 // pred_fallthru
      _
    // Predicated region
    $region14: #{tpu_custom_call.1} parent=1 // pred_check
      _
    $region15: #{tpu_custom_call.1} parent=1 // pred_check_branch
      %38 = sbr.rel (0) target = $region17
    $region16: #{tpu_custom_call.1} parent=1 // pred_region
      %39 = dma.done [#allocation6], 128
    $region17: #{tpu_custom_call.1} parent=1 // pred_fallthru
      _
    %v40 = vld [vmem:[#allocation2] sm:$0xf]
    %v41 = vld [vmem:[#allocation2 + $0x4] sm:$0xf]
    %v42 = vld [vmem:[#allocation5] sm:$0xf]
    %v43 = vld [vmem:[#allocation5 + $0x4] sm:$0xf]
    %v44 = vsub.f32 %v40, %v42
    %v45 = vsub.f32 %v41, %v43
    %vm46 = vcmask 257024
    %v47 = vsel %vm46, %v44, 0.0
    %v48 = vrot.slane %v47, 4
    %v49 = vadd.f32 %v47, %v48
    %v50 = vrot.slane %v49, 2
    %v51 = vadd.f32 %v49, %v50
    %v52 = vrot.slane %v51, 1
    %v53 = vadd.f32 %v51, %v52
    %v54 = vsel %vm46, %v45, 0.0
    %v55 = vrot.slane %v54, 4
    %v56 = vadd.f32 %v54, %v55
    %v57 = vrot.slane %v56, 2
    %v58 = vadd.f32 %v56, %v57
    %v59 = vrot.slane %v58, 1
    %v60 = vadd.f32 %v58, %v59
    %v61 = vmul.f32 %v53, %v53
    %v62 = vmul.f32 %v60, %v60
    %vm65 = vcmask 1041409
    %v66 = vsel %vm65, %v62, %v61
    %vm68 = vcmask 254976
    %v69 = vsel %vm68, %v66, 0.0
    %70 = vadd.xlane.f32.xlu0 %v69
    %v71 = vpop.xlane.xlu0 %70
    %v72 = vmul.f32 %v71, 0.0625
    %v73 = vsub.f32 %v72, 0.1
    %v74 = vmax.f32 %v73, 0.0
    %s75 = smul.u32 0, 2
    %v76 = vlaneseq
    %v77 = vshrl.u32 %v76, 7
    %v78 = vstv %s75
    %v79 = vadd.s32 %v78, %v77
    %vm80 = vcmp.lt.s32.totalorder %v79, 2
    %v81 = vsel %vm80, %v74, 0.0
    %vm82 = vcmask 1024
    %v83 = vsel %vm82, %v81, 0.0
    %84 = vadd.xlane.f32.xlu0 %v83
    %v85 = vpop.xlane.xlu0 %84
    %v86 = vrot.slane %v85, 4
    %v87 = vadd.f32 %v85, %v86
    %v88 = vrot.slane %v87, 2
    %v89 = vadd.f32 %v87, %v88
    %v90 = vrot.slane %v89, 1
    %v91 = vadd.f32 %v89, %v90
    %s92 = vtos %v91
    %v93 = vstv %s92
    %94 = vst [vmem:[#allocation7] sm:$0xff] %v93
    // Predicated region
    $region18: #{tpu_custom_call.1} parent=1 // pred_check
      _
    $region19: #{tpu_custom_call.1} parent=1 // pred_check_branch
      %96 = sbr.rel (0) target = $region21
    $region20: #{tpu_custom_call.1} parent=1 // pred_region
      %s98 = ssub.s32 128, 128
      %99 = vsyncadd [#allocation4], %s98
      %s101 = sshll.u32 [#allocation7], 4
      %s102 = int_to_ptr.vmem [resolvable:$true] %s101
      %104 = dma.vmem_to_hbm [thread:$0]  %s102, 128, %s2, [#allocation4]
    $region21: #{tpu_custom_call.1} parent=1 // pred_fallthru
      _
    // Predicated region
    $region22: #{tpu_custom_call.1} parent=1 // pred_check
      _
    $region23: #{tpu_custom_call.1} parent=1 // pred_check_branch
      %106 = sbr.rel (0) target = $region25
    $region24: #{tpu_custom_call.1} parent=1 // pred_region
      %107 = dma.done [#allocation4], 128
    $region25: #{tpu_custom_call.1} parent=1 // pred_fallthru
      _
    %108 = vsyncpa [#allocation3], 1
    %109 = vsyncpa [#allocation6], 1
    %110 = vsyncpa [#allocation4], 1

</llo_original>
